<compile_context>
chip_gen: v5e
topology: v5e:2x2
jax: 0.10.0
libtpu: 0.0.40
codegen_flags: <defaults>
</compile_context>

<pallas_src>
import functools
import math

import jax
import jax.numpy as jnp
from jax import lax
from jax.experimental import pallas as pl
from jax.experimental.pallas import tpu as pltpu


_MIN_PALLAS_MACS = 128 * 128 * 128  # below ~one MXU tile of work -> plain XLA dot


def _cdiv(a, b):
    return -(-a // b)


def _round_up(x, m):
    return _cdiv(x, m) * m


def _hw_config():
    """Generation-aware tile caps and VMEM budget."""
    try:
        vmem = pltpu.get_tpu_info().vmem_capacity_bytes
    except Exception:  # interpret mode / older jax / query unavailable
        vmem = None
    if vmem is not None and vmem >= (100 << 20):
        # v5e / v6e: 128 MiB physical VMEM, single TensorCore per chip.
        return dict(tm_cap=512, tn_cap=1024, tk_cap=2048,
                    vmem_limit=64 << 20, min_parallel_blocks=1)
    if vmem is not None:
        # v7x-class: 64 MiB per TC, 2 TCs share the "parallel" grid axes.
        return dict(tm_cap=256, tn_cap=512, tk_cap=1024,
                    vmem_limit=40 << 20, min_parallel_blocks=2)
    # Unknown hardware: conservative defaults.
    return dict(tm_cap=256, tn_cap=512, tk_cap=1024,
                vmem_limit=32 << 20, min_parallel_blocks=1)


# ----------------------------- kernels --------------------------------------

def _kernel_single(key_ref, w_ref, o_ref, *, compute_dtype):
    """Single K block: plain store, no accumulator state."""
    a = key_ref[...]
    b = w_ref[...]
    if compute_dtype is not None:
        a = a.astype(compute_dtype)
        b = b.astype(compute_dtype)
    o_ref[...] = jnp.dot(a, b, preferred_element_type=jnp.float32).astype(o_ref.dtype)


def _kernel_multik_f32out(key_ref, w_ref, o_ref, *, compute_dtype):
    """Multi-K reduction, f32 output: accumulate directly into the resident
    output block (its index_map ignores k), so no scratch and no finalize."""
    @pl.when(pl.program_id(2) == 0)
    def _():
        o_ref[...] = jnp.zeros_like(o_ref)

    a = key_ref[...]
    b = w_ref[...]
    if compute_dtype is not None:
        a = a.astype(compute_dtype)
        b = b.astype(compute_dtype)
    o_ref[...] += jnp.dot(a, b, preferred_element_type=jnp.float32)


def _kernel_multik_acc(key_ref, w_ref, o_ref, acc_ref, *, compute_dtype):
    """Multi-K reduction, non-f32 output: f32 VMEM accumulator + final cast."""
    @pl.when(pl.program_id(2) == 0)
    def _():
        acc_ref[...] = jnp.zeros_like(acc_ref)

    a = key_ref[...]
    b = w_ref[...]
    if compute_dtype is not None:
        a = a.astype(compute_dtype)
        b = b.astype(compute_dtype)
    acc_ref[...] += jnp.dot(a, b, preferred_element_type=jnp.float32)

    @pl.when(pl.program_id(2) == pl.num_programs(2) - 1)
    def _():
        o_ref[...] = acc_ref[...].astype(o_ref.dtype)


# ----------------------------- wrapper ---------------------------------------

def regressor_forward(key, w_and_b, *, compute_dtype=jnp.bfloat16, tile_caps=None):
    """h = key @ w   (b is unpacked but unused, matching the PyTorch module).

    compute_dtype: operand dtype fed to the MXU on the Pallas path (cast happens
    in-kernel on the VMEM tile; accumulation is always f32 and the output keeps
    the f32 result dtype).  bf16 is MXU-native on v5e/v6e/v7x; pass
    compute_dtype=None for full-f32 operands.
    tile_caps: optional (tm_cap, tn_cap, tk_cap) override (testing / tuning).
    """
    w, _b = w_and_b  # b unused, as in the PyTorch forward
    N, nh = key.shape
    nh2, M = w.shape
    assert nh == nh2, "key and w contraction dims must match"
    out_dtype = jnp.result_type(key.dtype, w.dtype)

    # ---- tiny problems: XLA fast path, zero kernel-launch overhead ----------
    if N * M * nh < _MIN_PALLAS_MACS:
        return jnp.dot(key, w, precision=lax.Precision.HIGHEST)

    cfg = _hw_config()
    tm_cap, tn_cap, tk_cap = (tile_caps if tile_caps is not None
                              else (cfg["tm_cap"], cfg["tn_cap"], cfg["tk_cap"]))

    # Sublane alignment follows the dtype actually DMA'd (the cast is in-kernel).
    m_align = max(8, 32 // jnp.dtype(key.dtype).itemsize)

    def pick(dim, cap, align):
        # Smallest aligned tile that keeps the block count at its minimum,
        # i.e. minimal edge-block padding instead of blindly using the cap.
        nblk = _cdiv(dim, cap)
        tile = _round_up(_cdiv(dim, nblk), align)
        return max(align, min(tile, _round_up(dim, align)))

    tm = pick(N, tm_cap, m_align)
    tn = pick(M, tn_cap, 128)        # lane dim: multiple of 128 keeps vst dense

    # K tile: full-K (no padding) when it fits the cap, else 128-aligned + pad.
    if nh <= tk_cap:
        tk, Kp = nh, nh
    else:
        tk = pick(nh, tk_cap, 128)
        Kp = _round_up(nh, tk)

    # v7x megacore: make sure both TensorCores get at least one (i, j) block.
    if cfg["min_parallel_blocks"] > 1:
        while _cdiv(N, tm) * _cdiv(M, tn) < cfg["min_parallel_blocks"]:
            if tn > 128:
                tn = _round_up(_cdiv(tn, 2), 128)
            elif tm > m_align:
                tm = _round_up(_cdiv(tm, 2), m_align)
            else:
                break

    # Zero-pad ONLY the contraction dim (needed for correct accumulation);
    # ragged N / M edges are handled by Pallas block masking.
    key_p, w_p = key, w
    if Kp != nh:
        key_p = jnp.pad(key_p, ((0, 0), (0, Kp - nh)))
        w_p = jnp.pad(w_p, ((0, Kp - nh), (0, 0)))

    grid = (_cdiv(N, tm), _cdiv(M, tn), Kp // tk)
    k_steps = grid[2]

    in_bytes = jnp.dtype(key.dtype).itemsize
    cost = pl.CostEstimate(
        flops=2 * N * M * Kp,
        transcendentals=0,
        bytes_accessed=(N * Kp + Kp * M) * in_bytes
        + N * M * jnp.dtype(out_dtype).itemsize,
    )

    if k_steps == 1:
        kernel = functools.partial(_kernel_single, compute_dtype=compute_dtype)
        scratch_shapes = []
    elif out_dtype == jnp.float32:
        kernel = functools.partial(_kernel_multik_f32out, compute_dtype=compute_dtype)
        scratch_shapes = []
    else:
        kernel = functools.partial(_kernel_multik_acc, compute_dtype=compute_dtype)
        scratch_shapes = [pltpu.VMEM((tm, tn), jnp.float32)]

    return pl.pallas_call(
        kernel,
        out_shape=jax.ShapeDtypeStruct((N, M), out_dtype),
        grid_spec=pltpu.PrefetchScalarGridSpec(
            num_scalar_prefetch=0,
            grid=grid,
            in_specs=[
                pl.BlockSpec((tm, tk), lambda i, j, k: (i, k)),
                pl.BlockSpec((tk, tn), lambda i, j, k: (k, j)),
            ],
            out_specs=pl.BlockSpec((tm, tn), lambda i, j, k: (i, j)),
            scratch_shapes=scratch_shapes,
        ),
        compiler_params=pltpu.CompilerParams(
            dimension_semantics=("parallel", "parallel", "arbitrary"),
            vmem_limit_bytes=cfg["vmem_limit"],
        ),
        cost_estimate=cost,
    )(key_p, w_p)


# ----------------------------- self-test --------------------------------------

def _make_inputs(rng, N, nh, M):
    """Deterministic inputs mirroring the PyTorch __init__ / forward args."""
    k_key, k_w, k_b = jax.random.split(rng, 3)
    bound = 1.0 / math.sqrt(nh)
    key_param = jax.random.uniform(
        k_key, (N, nh), minval=-bound, maxval=bound, dtype=jnp.float32
    )
    w = jax.random.normal(k_w, (nh, M), dtype=jnp.float32)
    b = jax.random.normal(k_b, (M,), dtype=jnp.float32)  # unpacked, unused
    return key_param, w, b


if __name__ == "__main__":
    # TODO(synk): `self.reg` is a parameter that never appears in forward(); nothing to port.
    rng = jax.random.PRNGKey(0)
    hp = jax.lax.Precision.HIGHEST

    # 1) Module-default tiny shapes (N=16, nh=32, M=8): XLA fast path.
    key1, w1, b1 = _make_inputs(rng, 16, 32, 8)
    h1 = jax.block_until_ready(regressor_forward(key1, (w1, b1)))
    assert h1.shape == (16, 8)
    assert jnp.allclose(h1, jnp.dot(key1, w1, precision=hp), atol=1e-4, rtol=1e-4)

    # 2) Ragged Pallas path with full-f32 operands: single K step, masked N/M
    #    edge blocks, no padded operand copies and no output slice.
    key2, w2, b2 = _make_inputs(jax.random.fold_in(rng, 1), 300, 200, 136)
    h2 = jax.block_until_ready(
        regressor_forward(key2, (w2, b2), compute_dtype=None))
    assert h2.shape == (300, 136)
    assert jnp.allclose(h2, jnp.dot(key2, w2, precision=hp), atol=5e-2, rtol=5e-2)

    # 3) Multi-K reduction accumulating into the resident f32 output block,
    #    ragged K (zero-padded 520 -> 768), bf16 operands + f32 accumulation.
    #    Small tile caps are forced so this path is exercised at small shapes.
    key3, w3, b3 = _make_inputs(jax.random.fold_in(rng, 2), 300, 520, 200)
    h3 = jax.block_until_ready(
        regressor_forward(key3, (w3, b3), tile_caps=(128, 128, 256)))
    assert h3.shape == (300, 200)
    assert jnp.allclose(h3, jnp.dot(key3, w3, precision=hp), atol=5e-2, rtol=5e-2)

    # 4) Hardware-derived tile caps, bf16 operands, aligned shapes.
    key4, w4, b4 = _make_inputs(jax.random.fold_in(rng, 3), 512, 1024, 256)
    h4 = jax.block_until_ready(regressor_forward(key4, (w4, b4)))
    assert h4.shape == (512, 256)
    assert jnp.allclose(h4, jnp.dot(key4, w4, precision=hp), atol=5e-2, rtol=5e-2)

    print("KERNEL_OK")
</pallas_src>

<mosaic_0001>
module attributes {stable_mosaic.version = 11 : i64} {
  func.func @_kernel_single(%arg0: i32, %arg1: i32, %arg2: i32, %arg3: memref<152x200xf32, #tpu.memory_space<vmem>>, %arg4: memref<200x256xf32, #tpu.memory_space<vmem>>, %arg5: memref<152x256xf32, #tpu.memory_space<vmem>>) attributes {dimension_semantics = [#tpu.dimension_semantics<parallel>, #tpu.dimension_semantics<parallel>, #tpu.dimension_semantics<arbitrary>], iteration_bounds = array<i64: 2, 1, 1>, scalar_prefetch = 0 : i64, scratch_operands = 0 : i64, tpu.core_type = #tpu.core_type<tc>, window_params = [{transform_indices = @transform_0, window_bounds = array<i64: 152, 200>}, {transform_indices = @transform_1, window_bounds = array<i64: 200, 256>}, {transform_indices = @transform_2, window_bounds = array<i64: 152, 256>}]} {
    %c0 = arith.constant 0 : index
    %c0_0 = arith.constant 0 : index
    %0 = vector.load %arg3[%c0, %c0_0] : memref<152x200xf32, #tpu.memory_space<vmem>>, vector<152x200xf32>
    %c0_1 = arith.constant 0 : index
    %c0_2 = arith.constant 0 : index
    %1 = vector.load %arg4[%c0_1, %c0_2] : memref<200x256xf32, #tpu.memory_space<vmem>>, vector<200x256xf32>
    %cst = arith.constant dense<0.000000e+00> : vector<152x256xf32>
    %2 = tpu.matmul %0, %1, %cst {dimension_numbers = #tpu.dot_dimension_numbers<[1], [0], [0], [1], [0, 0, 1, 1], [], []>} : vector<152x200xf32>, vector<200x256xf32>, vector<152x256xf32> -> vector<152x256xf32>
    %c0_3 = arith.constant 0 : index
    %c0_4 = arith.constant 0 : index
    %3 = vector.load %arg5[%c0_3, %c0_4] : memref<152x256xf32, #tpu.memory_space<vmem>>, vector<152x256xf32>
    tpu.vector_store %arg5[%c0_3, %c0_4], %2 {strides = array<i32>} : memref<152x256xf32, #tpu.memory_space<vmem>>, vector<152x256xf32>,
    return
  }
  func.func @transform_0(%arg0: i32, %arg1: i32, %arg2: i32) -> (i32, i32) {
    %c0_i32 = arith.constant 0 : i32
    return %arg0, %arg2 : i32, i32
  }
  func.func @transform_1(%arg0: i32, %arg1: i32, %arg2: i32) -> (i32, i32) {
    %c0_i32 = arith.constant 0 : i32
    return %arg2, %arg1 : i32, i32
  }
  func.func @transform_2(%arg0: i32, %arg1: i32, %arg2: i32) -> (i32, i32) {
    %c0_i32 = arith.constant 0 : i32
    return %arg0, %arg1 : i32, i32
  }
}

</mosaic_0001>

<llo_original>
// kernel: tpu_custom_call.1
$region0: #{tpu_custom_call.1}
  #allocation0 [shape = 'u32[]', space=smem, size = 0x4, offset = 0x4, fixed_abs, tag = 'smem constant byte address 0x4 - core index']
  #allocation1 [shape = 'u32[72,128]{1,0:T(1,128)}', space=vmem, size = 0x9000, scoped, tag = 'internal scratch']
  %s0 = inlined_call_operand.vmem [shape: f32[300,200], index: 0, kind: input, shape index: {}]
  %s1 = inlined_call_operand.vmem [shape: f32[200,136], index: 1, kind: input, shape index: {}]
  %s2 = inlined_call_operand.vmem [shape: f32[300,136], index: 2, kind: output, shape index: {}]
  %s3 = sld [smem:[#allocation0]]
  $region41: #{tpu_custom_call.1} parent=0
    _
  %s5 = ssub.s32 1, %s3
  %s6 = scalar_select 0, %s5, %s3
  loop: start=0, step=1, limit=4
  $region2: #{tpu_custom_call.1} parent=0 // loop_pre_header
    _
  $region3: #{tpu_custom_call.1} parent=0 // loop_header
    %s8 = sphi 0, %s12
    %p9 = scmp.ge.s32.totalorder %s8, 4
    %s15 = sphi 0, %s34
    %s16 = sphi 0, %s30
    %s17 = sphi 0, %s26
    %s18 = sphi 0, %s15
    %s19 = sphi 0, %s16
    %s20 = sphi 0, %s17
    %s21 = sphi 0, %s18
    %s22 = sphi 0, %s19
    %s23 = sphi 0, %s20
    %s39 = sphi 0, %s41
    %s42 = sphi 0, %s39
    %s43 = sphi 0, %s42
    %s59 = sphi 0, %s43
    %s67 = sphi 0, %s69
    %s70 = sphi 0, %s67
    %s71 = sphi 0, %s70
    %s87 = sphi 0, %s71
    %s95 = sphi 0, %s97
    %s98 = sphi 0, %s95
    %s99 = sphi 0, %s98
    %s115 = sphi 0, %s99
  $region4: #{tpu_custom_call.1} parent=0 // loop_header_branch
    %11 = sbr.rel (%p9) target = $region8
  $region5: #{tpu_custom_call.1} parent=0 // loop_body
    %s13 = ssub.s32 %s8, 1
    %s14 = ssub.s32 %s8, 2
    %s24 = sadd.s32 1, %s17
    %p25 = scmp.ge.s32.totalorder %s24, 1
    %s26 = scalar_select %p25, 0, %s24
    %s27 = sadd.s32 1, %s16
    %s28 = scalar_select %p25, %s27, %s16
    %p29 = scmp.ge.s32.totalorder %s28, 1
    %s30 = scalar_select %p29, 0, %s28
    %s31 = sadd.s32 1, %s15
    %s32 = scalar_select %p29, %s31, %s15
    %p33 = scmp.ge.s32.totalorder %s32, 2
    %s34 = scalar_select %p33, 0, %s32
    %s35 = ssub.s32 %s15, %s34
    %s36 = ssub.s32 %s17, %s26
    %s37 = sor.u32 %s35, %s36
    %p38 = scmp.eq.s32.totalorder %s37, 0
    %s40 = sadd.s32 %s39, 1
    %s41 = scalar_select %p38, %s39, %s40
    %p44 = pneg %p38
    %p45 = scmp.eq.s32.totalorder %s8, 1
    %p46 = por %p44, %p45
    %p47 = scmp.ne.s32.totalorder %s39, %s42
    %p48 = scmp.eq.s32.totalorder %s8, 0
    %p49 = por %p47, %p48
    %p50 = scmp.ne.s32.totalorder %s39, %s42
    %p51 = scmp.eq.s32.totalorder %s13, 1
    %p52 = por %p50, %p51
    %p53 = scmp.ne.s32.totalorder %s42, %s43
    %p54 = scmp.eq.s32.totalorder %s13, 0
    %p55 = por %p53, %p54
    %p56 = scmp.ne.s32.totalorder %s42, %s43
    %p57 = scmp.eq.s32.totalorder %s14, 1
    %p58 = por %p56, %p57
    %p60 = scmp.ne.s32.totalorder %s43, %s59
    %p61 = scmp.eq.s32.totalorder %s14, 0
    %p62 = por %p60, %p61
    %s63 = ssub.s32 %s17, %s26
    %s64 = ssub.s32 %s16, %s30
    %s65 = sor.u32 %s63, %s64
    %p66 = scmp.eq.s32.totalorder %s65, 0
    %s68 = sadd.s32 %s67, 1
    %s69 = scalar_select %p66, %s67, %s68
    %p72 = pneg %p66
    %p73 = scmp.eq.s32.totalorder %s8, 1
    %p74 = por %p72, %p73
    %p75 = scmp.ne.s32.totalorder %s67, %s70
    %p76 = scmp.eq.s32.totalorder %s8, 0
    %p77 = por %p75, %p76
    %p78 = scmp.ne.s32.totalorder %s67, %s70
    %p79 = scmp.eq.s32.totalorder %s13, 1
    %p80 = por %p78, %p79
    %p81 = scmp.ne.s32.totalorder %s70, %s71
    %p82 = scmp.eq.s32.totalorder %s13, 0
    %p83 = por %p81, %p82
    %p84 = scmp.ne.s32.totalorder %s70, %s71
    %p85 = scmp.eq.s32.totalorder %s14, 1
    %p86 = por %p84, %p85
    %p88 = scmp.ne.s32.totalorder %s71, %s87
    %p89 = scmp.eq.s32.totalorder %s14, 0
    %p90 = por %p88, %p89
    %s91 = ssub.s32 %s15, %s34
    %s92 = ssub.s32 %s16, %s30
    %s93 = sor.u32 %s91, %s92
    %p94 = scmp.eq.s32.totalorder %s93, 0
    %s96 = sadd.s32 %s95, 1
    %s97 = scalar_select %p94, %s95, %s96
    %p100 = pneg %p94
    %p101 = scmp.eq.s32.totalorder %s8, 1
    %p102 = por %p100, %p101
    %p103 = scmp.ne.s32.totalorder %s95, %s98
    %p104 = scmp.eq.s32.totalorder %s8, 0
    %p105 = por %p103, %p104
    %p106 = scmp.ne.s32.totalorder %s95, %s98
    %p107 = scmp.eq.s32.totalorder %s13, 1
    %p108 = por %p106, %p107
    %p109 = scmp.ne.s32.totalorder %s98, %s99
    %p110 = scmp.eq.s32.totalorder %s13, 0
    %p111 = por %p109, %p110
    %p112 = scmp.ne.s32.totalorder %s98, %s99
    %p113 = scmp.eq.s32.totalorder %s14, 1
    %p114 = por %p112, %p113
    %p116 = scmp.ne.s32.totalorder %s99, %s115
    %p117 = scmp.eq.s32.totalorder %s14, 0
    %p118 = por %p116, %p117
    %p119 = scmp.le.s32.totalorder 1, %s8
    %p120 = scmp.lt.s32.totalorder %s8, 3
    %p121 = pnand %p119, %p120
    %p122 = pneg %p121
    // Predicated region
    $region9: #{tpu_custom_call.1} parent=5 // pred_check
      _
    $region10: #{tpu_custom_call.1} parent=5 // pred_check_branch
      %124 = sbr.rel (%p121) target = $region12
    $region11: #{tpu_custom_call.1} parent=5 // pred_region
      %s125 = ssub.s32 %s8, 1
      // Predicated region
      $region13: #{tpu_custom_call.1} parent=11 // pred_check
        %p126 = pneg %p83
      $region14: #{tpu_custom_call.1} parent=11 // pred_check_branch
        %128 = sbr.rel (%p126) target = $region16
      $region15: #{tpu_custom_call.1} parent=11 // pred_region
        %s129 = smul.u32 25, %s20
        %s130 = smul.u32 2, %s19
        %p131 = scmp.lt.s32.totalorder %s129, 24
        %s132 = scalar_select %p131, %s129, 24
        %p133 = scmp.lt.s32.totalorder %s130, 1
        %s134 = scalar_select %p133, %s130, 1
        %s135 = smul.addr %s132, 2
        %s136 = sadd.s32 %s134, %s135
        %s137 = smul.addr %s136, 8
        %s138 = scalar_lea.vmem %s1, %s137
        %s139 = smul.u32 25, %s20
        %s140 = smul.u32 2, %s19
      $region16: #{tpu_custom_call.1} parent=11 // pred_fallthru
        _
    $region12: #{tpu_custom_call.1} parent=5 // pred_fallthru
      _
    %p141 = scmp.lt.s32.totalorder %s8, 2
    // Predicated region
    $region17: #{tpu_custom_call.1} parent=5 // pred_check
      %p142 = pneg %p141
    $region18: #{tpu_custom_call.1} parent=5 // pred_check_branch
      %144 = sbr.rel (%p142) target = $region20
    $region19: #{tpu_custom_call.1} parent=5 // pred_region
      // Predicated region
      $region21: #{tpu_custom_call.1} parent=19 // pred_check
        %p145 = pneg %p49
      $region22: #{tpu_custom_call.1} parent=19 // pred_check_branch
        %147 = sbr.rel (%p145) target = $region24
      $region23: #{tpu_custom_call.1} parent=19 // pred_region
        %s148 = smul.u32 19, %s15
        %s149 = smul.u32 2, %s17
        %p150 = scmp.lt.s32.totalorder %s148, 37
        %s151 = scalar_select %p150, %s148, 37
        %p152 = scmp.lt.s32.totalorder %s149, 1
        %s153 = scalar_select %p152, %s149, 1
        %s154 = smul.addr %s151, 2
        %s155 = sadd.s32 %s153, %s154
        %s156 = smul.addr %s155, 8
        %s157 = scalar_lea.vmem %s0, %s156
        %s158 = smul.u32 19, %s15
        %s159 = smul.u32 2, %s17
      $region24: #{tpu_custom_call.1} parent=19 // pred_fallthru
        _
    $region20: #{tpu_custom_call.1} parent=5 // pred_fallthru
      _
    %p160 = scmp.le.s32.totalorder 1, %s8
    %p161 = scmp.lt.s32.totalorder %s8, 3
    %p162 = pnand %p160, %p161
    %p163 = pneg %p162
    // Predicated region
    $region25: #{tpu_custom_call.1} parent=5 // pred_check
      _
    $region26: #{tpu_custom_call.1} parent=5 // pred_check_branch
      %165 = sbr.rel (%p162) target = $region28
    $region27: #{tpu_custom_call.1} parent=5 // pred_region
      %s166 = ssub.s32 %s8, 1
      %s167 = smul.u32 19, %s18
      %s168 = smul.u32 2, %s20
      %p169 = scmp.lt.s32.totalorder %s167, 37
      %s170 = scalar_select %p169, %s167, 37
      %p171 = scmp.lt.s32.totalorder %s168, 1
      %s172 = scalar_select %p171, %s168, 1
      %s173 = smul.addr %s170, 2
      %s174 = sadd.s32 %s172, %s173
      %s175 = smul.addr %s174, 8
      %s176 = scalar_lea.vmem %s0, %s175
      %p177 = pneg %p55
      %p178 = pneg %p52
      %s179 = smul.u32 25, %s20
      %s180 = smul.u32 2, %s19
      %p181 = scmp.lt.s32.totalorder %s179, 24
      %s182 = scalar_select %p181, %s179, 24
      %p183 = scmp.lt.s32.totalorder %s180, 1
      %s184 = scalar_select %p183, %s180, 1
      %s185 = smul.addr %s182, 2
      %s186 = sadd.s32 %s184, %s185
      %s187 = smul.addr %s186, 8
      %s188 = scalar_lea.vmem %s1, %s187
      %p189 = pneg %p83
      %p190 = pneg %p80
      %p191 = pneg %p111
      %p192 = pneg %p108
      %s193 = smul.u32 19, %s18
      %s194 = smul.u32 2, %s19
      %p195 = scmp.lt.s32.totalorder %s193, 37
      %s196 = scalar_select %p195, %s193, 37
      %p197 = scmp.lt.s32.totalorder %s194, 1
      %s198 = scalar_select %p197, %s194, 1
      %s199 = smul.addr %s196, 2
      %s200 = sadd.s32 %s198, %s199
      %s201 = smul.addr %s200, 8
      %s202 = scalar_lea.vmem %s2, %s201
      %s203 = smul.u32 19, %s18
      %s204 = smul.u32 2, %s20
      %p205 = scmp.lt.s32.totalorder %s203, 37
      %s206 = scalar_select %p205, %s203, 37
      %p207 = scmp.lt.s32.totalorder %s204, 1
      %s208 = scalar_select %p207, %s204, 1
      %s209 = smul.addr %s206, 2
      %s210 = sadd.s32 %s208, %s209
      %s211 = smul.addr %s210, 8
      %s212 = scalar_lea.vmem %s0, %s211
      %s213 = smul.u32 19, %s18
      %s214 = smul.u32 2, %s20
      %s215 = smul.u32 25, %s20
      %s216 = smul.u32 2, %s19
      %p217 = scmp.lt.s32.totalorder %s215, 24
      %s218 = scalar_select %p217, %s215, 24
      %p219 = scmp.lt.s32.totalorder %s216, 1
      %s220 = scalar_select %p219, %s216, 1
      %s221 = smul.addr %s218, 2
      %s222 = sadd.s32 %s220, %s221
      %s223 = smul.addr %s222, 8
      %s224 = scalar_lea.vmem %s1, %s223
      %s225 = smul.u32 25, %s20
      %s226 = smul.u32 2, %s19
      %s227 = smul.u32 19, %s18
      %s228 = smul.u32 2, %s19
      %p229 = scmp.lt.s32.totalorder %s227, 37
      %s230 = scalar_select %p229, %s227, 37
      %p231 = scmp.lt.s32.totalorder %s228, 1
      %s232 = scalar_select %p231, %s228, 1
      %s233 = smul.addr %s230, 2
      %s234 = sadd.s32 %s232, %s233
      %s235 = smul.addr %s234, 8
      %s236 = scalar_lea.vmem %s2, %s235
      %s237 = smul.u32 19, %s18
      %s238 = smul.u32 2, %s19
      %v239 = vld [vmem:[%s212] sm:$0xff]
      %v240 = vld [vmem:[%s212 + $0x8] sm:$0xff]
      %v241 = vld [vmem:[%s212 + $0x10] sm:$0xff]
      %v242 = vld [vmem:[%s212 + $0x18] sm:$0xff]
      %v243 = vld [vmem:[%s212 + $0x20] sm:$0xff]
      %v244 = vld [vmem:[%s212 + $0x28] sm:$0xff]
      %v245 = vld [vmem:[%s212 + $0x30] sm:$0xff]
      %v246 = vld [vmem:[%s212 + $0x38] sm:$0xff]
      %v247 = vld [vmem:[%s212 + $0x40] sm:$0xff]
      %v248 = vld [vmem:[%s212 + $0x48] sm:$0xff]
      %v249 = vld [vmem:[%s212 + $0x50] sm:$0xff]
      %v250 = vld [vmem:[%s212 + $0x58] sm:$0xff]
      %v251 = vld [vmem:[%s212 + $0x60] sm:$0xff]
      %v252 = vld [vmem:[%s212 + $0x68] sm:$0xff]
      %v253 = vld [vmem:[%s212 + $0x70] sm:$0xff]
      %v254 = vld [vmem:[%s212 + $0x78] sm:$0xff]
      %v255 = vld [vmem:[%s212 + $0x80] sm:$0xff]
      %v256 = vld [vmem:[%s212 + $0x88] sm:$0xff]
      %v257 = vld [vmem:[%s212 + $0x90] sm:$0xff]
      %v258 = vld [vmem:[%s212 + $0x98] sm:$0xff]
      %v259 = vld [vmem:[%s212 + $0xa0] sm:$0xff]
      %v260 = vld [vmem:[%s212 + $0xa8] sm:$0xff]
      %v261 = vld [vmem:[%s212 + $0xb0] sm:$0xff]
      %v262 = vld [vmem:[%s212 + $0xb8] sm:$0xff]
      %v263 = vld [vmem:[%s212 + $0xc0] sm:$0xff]
      %v264 = vld [vmem:[%s212 + $0xc8] sm:$0xff]
      %v265 = vld [vmem:[%s212 + $0xd0] sm:$0xff]
      %v266 = vld [vmem:[%s212 + $0xd8] sm:$0xff]
      %v267 = vld [vmem:[%s212 + $0xe0] sm:$0xff]
      %v268 = vld [vmem:[%s212 + $0xe8] sm:$0xff]
      %v269 = vld [vmem:[%s212 + $0xf0] sm:$0xff]
      %v270 = vld [vmem:[%s212 + $0xf8] sm:$0xff]
      %v271 = vld [vmem:[%s212 + $0x100] sm:$0xff]
      %v272 = vld [vmem:[%s212 + $0x108] sm:$0xff]
      %v273 = vld [vmem:[%s212 + $0x110] sm:$0xff]
      %v274 = vld [vmem:[%s212 + $0x118] sm:$0xff]
      %v275 = vld [vmem:[%s212 + $0x120] sm:$0xff]
      %v276 = vld [vmem:[%s212 + $0x128] sm:$0xff]
      %v277 = vld [vmem:[%s224] sm:$0xff]
      %v278 = vld [vmem:[%s224 + $0x8] sm:$0xff]
      %v279 = vld [vmem:[%s224 + $0x10] sm:$0xff]
      %v280 = vld [vmem:[%s224 + $0x18] sm:$0xff]
      %v281 = vld [vmem:[%s224 + $0x20] sm:$0xff]
      %v282 = vld [vmem:[%s224 + $0x28] sm:$0xff]
      %v283 = vld [vmem:[%s224 + $0x30] sm:$0xff]
      %v284 = vld [vmem:[%s224 + $0x38] sm:$0xff]
      %v285 = vld [vmem:[%s224 + $0x40] sm:$0xff]
      %v286 = vld [vmem:[%s224 + $0x48] sm:$0xff]
      %v287 = vld [vmem:[%s224 + $0x50] sm:$0xff]
      %v288 = vld [vmem:[%s224 + $0x58] sm:$0xff]
      %v289 = vld [vmem:[%s224 + $0x60] sm:$0xff]
      %v290 = vld [vmem:[%s224 + $0x68] sm:$0xff]
      %v291 = vld [vmem:[%s224 + $0x70] sm:$0xff]
      %v292 = vld [vmem:[%s224 + $0x78] sm:$0xff]
      %v293 = vld [vmem:[%s224 + $0x80] sm:$0xff]
      %v294 = vld [vmem:[%s224 + $0x88] sm:$0xff]
      %v295 = vld [vmem:[%s224 + $0x90] sm:$0xff]
      %v296 = vld [vmem:[%s224 + $0x98] sm:$0xff]
      %v297 = vld [vmem:[%s224 + $0xa0] sm:$0xff]
      %v298 = vld [vmem:[%s224 + $0xa8] sm:$0xff]
      %v299 = vld [vmem:[%s224 + $0xb0] sm:$0xff]
      %v300 = vld [vmem:[%s224 + $0xb8] sm:$0xff]
      %v301 = vld [vmem:[%s224 + $0xc0] sm:$0xff]
      %v302 = vld [vmem:[%s224 + $0xc8] sm:$0xff]
      %v303 = vld [vmem:[%s224 + $0xd0] sm:$0xff]
      %v304 = vld [vmem:[%s224 + $0xd8] sm:$0xff]
      %v305 = vld [vmem:[%s224 + $0xe0] sm:$0xff]
      %v306 = vld [vmem:[%s224 + $0xe8] sm:$0xff]
      %v307 = vld [vmem:[%s224 + $0xf0] sm:$0xff]
      %v308 = vld [vmem:[%s224 + $0xf8] sm:$0xff]
      %v309 = vld [vmem:[%s224 + $0x100] sm:$0xff]
      %v310 = vld [vmem:[%s224 + $0x108] sm:$0xff]
      %v311 = vld [vmem:[%s224 + $0x110] sm:$0xff]
      %v312 = vld [vmem:[%s224 + $0x118] sm:$0xff]
      %v313 = vld [vmem:[%s224 + $0x120] sm:$0xff]
      %v314 = vld [vmem:[%s224 + $0x128] sm:$0xff]
      %v315 = vld [vmem:[%s224 + $0x130] sm:$0xff]
      %v316 = vld [vmem:[%s224 + $0x138] sm:$0xff]
      %v317 = vld [vmem:[%s224 + $0x140] sm:$0xff]
      %v318 = vld [vmem:[%s224 + $0x148] sm:$0xff]
      %v319 = vld [vmem:[%s224 + $0x150] sm:$0xff]
      %v320 = vld [vmem:[%s224 + $0x158] sm:$0xff]
      %v321 = vld [vmem:[%s224 + $0x160] sm:$0xff]
      %v322 = vld [vmem:[%s224 + $0x168] sm:$0xff]
      %v323 = vld [vmem:[%s224 + $0x170] sm:$0xff]
      %v324 = vld [vmem:[%s224 + $0x178] sm:$0xff]
      %v325 = vld [vmem:[%s224 + $0x180] sm:$0xff]
      %v326 = vld [vmem:[%s224 + $0x188] sm:$0xff]
      %vm327 = vcmask 588800
      %v329 = vsel %vm327, %v240, 0
      %v332 = vsel %vm327, %v242, 0
      %v335 = vsel %vm327, %v244, 0
      %v338 = vsel %vm327, %v246, 0
      %v341 = vsel %vm327, %v248, 0
      %v344 = vsel %vm327, %v250, 0
      %v347 = vsel %vm327, %v252, 0
      %v350 = vsel %vm327, %v254, 0
      %v353 = vsel %vm327, %v256, 0
      %v356 = vsel %vm327, %v258, 0
      %v359 = vsel %vm327, %v260, 0
      %v362 = vsel %vm327, %v262, 0
      %v365 = vsel %vm327, %v264, 0
      %v368 = vsel %vm327, %v266, 0
      %v371 = vsel %vm327, %v268, 0
      %v374 = vsel %vm327, %v270, 0
      %v377 = vsel %vm327, %v272, 0
      %v380 = vsel %vm327, %v274, 0
      %v383 = vsel %vm327, %v276, 0
      %385 = vmatpush.msra.mxu0 %v307
      %386 = vmatpush.msra.mxu0 %v305
      %387 = vmatpush.msra.mxu0 %v303
      %388 = vmatpush.msra.mxu0 %v301
      %389 = vmatpush.msra.mxu0 %v299
      %390 = vmatpush.msra.mxu0 %v297
      %391 = vmatpush.msra.mxu0 %v295
      %392 = vmatpush.msra.mxu0 %v293
      %393 = vmatpush.msra.mxu0 %v291
      %394 = vmatpush.msra.mxu0 %v289
      %395 = vmatpush.msra.mxu0 %v287
      %396 = vmatpush.msra.mxu0 %v285
      %397 = vmatpush.msra.mxu0 %v283
      %398 = vmatpush.msra.mxu0 %v281
      %399 = vmatpush.msra.mxu0 %v279
      %400 = vmatpush.msra.mxu0 %v277
      %401 = vmatmul.f32.gmra.mxu0 %v239
      %v402 = vpop.f32.mrf.mxu0
      %v403 = vadd.f32 0.0, %v402
      %404 = vmatmul.f32.gmra.mxu0 %v241
      %v405 = vpop.f32.mrf.mxu0
      %v406 = vadd.f32 0.0, %v405
      %407 = vmatmul.f32.gmra.mxu0 %v243
      %v408 = vpop.f32.mrf.mxu0
      %v409 = vadd.f32 0.0, %v408
      %410 = vmatmul.f32.gmra.mxu0 %v245
      %v411 = vpop.f32.mrf.mxu0
      %v412 = vadd.f32 0.0, %v411
      %413 = vmatmul.f32.gmra.mxu0 %v247
      %v414 = vpop.f32.mrf.mxu0
      %v415 = vadd.f32 0.0, %v414
      %416 = vmatmul.f32.gmra.mxu0 %v249
      %v417 = vpop.f32.mrf.mxu0
      %v418 = vadd.f32 0.0, %v417
      %419 = vmatmul.f32.gmra.mxu0 %v251
      %v420 = vpop.f32.mrf.mxu0
      %v421 = vadd.f32 0.0, %v420
      %422 = vmatmul.f32.gmra.mxu0 %v253
      %v423 = vpop.f32.mrf.mxu0
      %v424 = vadd.f32 0.0, %v423
      %425 = vmatmul.f32.gmra.mxu0 %v255
      %v426 = vpop.f32.mrf.mxu0
      %v427 = vadd.f32 0.0, %v426
      %428 = vmatmul.f32.gmra.mxu0 %v257
      %v429 = vpop.f32.mrf.mxu0
      %v430 = vadd.f32 0.0, %v429
      %431 = vmatmul.f32.gmra.mxu0 %v259
      %v432 = vpop.f32.mrf.mxu0
      %v433 = vadd.f32 0.0, %v432
      %434 = vmatmul.f32.gmra.mxu0 %v261
      %v435 = vpop.f32.mrf.mxu0
      %v436 = vadd.f32 0.0, %v435
      %437 = vmatmul.f32.gmra.mxu0 %v263
      %v438 = vpop.f32.mrf.mxu0
      %v439 = vadd.f32 0.0, %v438
      %440 = vmatmul.f32.gmra.mxu0 %v265
      %v441 = vpop.f32.mrf.mxu0
      %v442 = vadd.f32 0.0, %v441
      %443 = vmatmul.f32.gmra.mxu0 %v267
      %v444 = vpop.f32.mrf.mxu0
      %v445 = vadd.f32 0.0, %v444
      %446 = vmatmul.f32.gmra.mxu0 %v269
      %v447 = vpop.f32.mrf.mxu0
      %v448 = vadd.f32 0.0, %v447
      %449 = vmatmul.f32.gmra.mxu0 %v271
      %v450 = vpop.f32.mrf.mxu0
      %v451 = vadd.f32 0.0, %v450
      %452 = vmatmul.f32.gmra.mxu0 %v273
      %v453 = vpop.f32.mrf.mxu0
      %v454 = vadd.f32 0.0, %v453
      %455 = vmatmul.f32.gmra.mxu0 %v275
      %v456 = vpop.f32.mrf.mxu0
      %v457 = vadd.f32 0.0, %v456
      %458 = vdwg.mxu0
      %459 = vmatpush.msra.mxu0 0.0
      %460 = vmatpush.msra.mxu0 0.0
      %461 = vmatpush.msra.mxu0 0.0
      %462 = vmatpush.msra.mxu0 0.0
      %463 = vmatpush.msra.mxu0 0.0
      %464 = vmatpush.msra.mxu0 0.0
      %465 = vmatpush.msra.mxu0 0.0
      %466 = vmatpush.msra.mxu0 %v325
      %467 = vmatpush.msra.mxu0 %v323
      %468 = vmatpush.msra.mxu0 %v321
      %469 = vmatpush.msra.mxu0 %v319
      %470 = vmatpush.msra.mxu0 %v317
      %471 = vmatpush.msra.mxu0 %v315
      %472 = vmatpush.msra.mxu0 %v313
      %473 = vmatpush.msra.mxu0 %v311
      %474 = vmatpush.msra.mxu0 %v309
      %475 = vmatmul.f32.gmra.mxu0 %v329
      %v476 = vpop.f32.mrf.mxu0
      %v477 = vadd.f32 %v403, %v476
      %478 = vmatmul.f32.gmra.mxu0 %v332
      %v479 = vpop.f32.mrf.mxu0
      %v480 = vadd.f32 %v406, %v479
      %481 = vmatmul.f32.gmra.mxu0 %v335
      %v482 = vpop.f32.mrf.mxu0
      %v483 = vadd.f32 %v409, %v482
      %484 = vmatmul.f32.gmra.mxu0 %v338
      %v485 = vpop.f32.mrf.mxu0
      %v486 = vadd.f32 %v412, %v485
      %487 = vmatmul.f32.gmra.mxu0 %v341
      %v488 = vpop.f32.mrf.mxu0
      %v489 = vadd.f32 %v415, %v488
      %490 = vmatmul.f32.gmra.mxu0 %v344
      %v491 = vpop.f32.mrf.mxu0
      %v492 = vadd.f32 %v418, %v491
      %493 = vmatmul.f32.gmra.mxu0 %v347
      %v494 = vpop.f32.mrf.mxu0
      %v495 = vadd.f32 %v421, %v494
      %496 = vmatmul.f32.gmra.mxu0 %v350
      %v497 = vpop.f32.mrf.mxu0
      %v498 = vadd.f32 %v424, %v497
      %499 = vmatmul.f32.gmra.mxu0 %v353
      %v500 = vpop.f32.mrf.mxu0
      %v501 = vadd.f32 %v427, %v500
      %502 = vmatmul.f32.gmra.mxu0 %v356
      %v503 = vpop.f32.mrf.mxu0
      %v504 = vadd.f32 %v430, %v503
      %505 = vmatmul.f32.gmra.mxu0 %v359
      %v506 = vpop.f32.mrf.mxu0
      %v507 = vadd.f32 %v433, %v506
      %508 = vmatmul.f32.gmra.mxu0 %v362
      %v509 = vpop.f32.mrf.mxu0
      %v510 = vadd.f32 %v436, %v509
      %511 = vmatmul.f32.gmra.mxu0 %v365
      %v512 = vpop.f32.mrf.mxu0
      %v513 = vadd.f32 %v439, %v512
      %514 = vmatmul.f32.gmra.mxu0 %v368
      %v515 = vpop.f32.mrf.mxu0
      %v516 = vadd.f32 %v442, %v515
      %517 = vmatmul.f32.gmra.mxu0 %v371
      %v518 = vpop.f32.mrf.mxu0
      %v519 = vadd.f32 %v445, %v518
      %520 = vmatmul.f32.gmra.mxu0 %v374
      %v521 = vpop.f32.mrf.mxu0
      %v522 = vadd.f32 %v448, %v521
      %523 = vmatmul.f32.gmra.mxu0 %v377
      %v524 = vpop.f32.mrf.mxu0
      %v525 = vadd.f32 %v451, %v524
      %526 = vmatmul.f32.gmra.mxu0 %v380
      %v527 = vpop.f32.mrf.mxu0
      %v528 = vadd.f32 %v454, %v527
      %529 = vmatmul.f32.gmra.mxu0 %v383
      %v530 = vpop.f32.mrf.mxu0
      %v531 = vadd.f32 %v457, %v530
      %532 = vdwg.mxu0
      %533 = vmatpush.msra.mxu0 %v308
      %534 = vmatpush.msra.mxu0 %v306
      %535 = vmatpush.msra.mxu0 %v304
      %536 = vmatpush.msra.mxu0 %v302
      %537 = vmatpush.msra.mxu0 %v300
      %538 = vmatpush.msra.mxu0 %v298
      %539 = vmatpush.msra.mxu0 %v296
      %540 = vmatpush.msra.mxu0 %v294
      %541 = vmatpush.msra.mxu0 %v292
      %542 = vmatpush.msra.mxu0 %v290
      %543 = vmatpush.msra.mxu0 %v288
      %544 = vmatpush.msra.mxu0 %v286
      %545 = vmatpush.msra.mxu0 %v284
      %546 = vmatpush.msra.mxu0 %v282
      %547 = vmatpush.msra.mxu0 %v280
      %548 = vmatpush.msra.mxu0 %v278
      %549 = vmatmul.f32.gmra.mxu0 %v239
      %v550 = vpop.f32.mrf.mxu0
      %v551 = vadd.f32 0.0, %v550
      %552 = vmatmul.f32.gmra.mxu0 %v241
      %v553 = vpop.f32.mrf.mxu0
      %v554 = vadd.f32 0.0, %v553
      %555 = vmatmul.f32.gmra.mxu0 %v243
      %v556 = vpop.f32.mrf.mxu0
      %v557 = vadd.f32 0.0, %v556
      %558 = vmatmul.f32.gmra.mxu0 %v245
      %v559 = vpop.f32.mrf.mxu0
      %v560 = vadd.f32 0.0, %v559
      %561 = vmatmul.f32.gmra.mxu0 %v247
      %v562 = vpop.f32.mrf.mxu0
      %v563 = vadd.f32 0.0, %v562
      %564 = vmatmul.f32.gmra.mxu0 %v249
      %v565 = vpop.f32.mrf.mxu0
      %v566 = vadd.f32 0.0, %v565
      %567 = vmatmul.f32.gmra.mxu0 %v251
      %v568 = vpop.f32.mrf.mxu0
      %v569 = vadd.f32 0.0, %v568
      %570 = vmatmul.f32.gmra.mxu0 %v253
      %v571 = vpop.f32.mrf.mxu0
      %v572 = vadd.f32 0.0, %v571
      %573 = vmatmul.f32.gmra.mxu0 %v255
      %v574 = vpop.f32.mrf.mxu0
      %v575 = vadd.f32 0.0, %v574
      %576 = vmatmul.f32.gmra.mxu0 %v257
      %v577 = vpop.f32.mrf.mxu0
      %v578 = vadd.f32 0.0, %v577
      %579 = vmatmul.f32.gmra.mxu0 %v259
      %v580 = vpop.f32.mrf.mxu0
      %v581 = vadd.f32 0.0, %v580
      %582 = vmatmul.f32.gmra.mxu0 %v261
      %v583 = vpop.f32.mrf.mxu0
      %v584 = vadd.f32 0.0, %v583
      %585 = vmatmul.f32.gmra.mxu0 %v263
      %v586 = vpop.f32.mrf.mxu0
      %v587 = vadd.f32 0.0, %v586
      %588 = vmatmul.f32.gmra.mxu0 %v265
      %v589 = vpop.f32.mrf.mxu0
      %v590 = vadd.f32 0.0, %v589
      %591 = vmatmul.f32.gmra.mxu0 %v267
      %v592 = vpop.f32.mrf.mxu0
      %v593 = vadd.f32 0.0, %v592
      %594 = vmatmul.f32.gmra.mxu0 %v269
      %v595 = vpop.f32.mrf.mxu0
      %v596 = vadd.f32 0.0, %v595
      %597 = vmatmul.f32.gmra.mxu0 %v271
      %v598 = vpop.f32.mrf.mxu0
      %v599 = vadd.f32 0.0, %v598
      %600 = vmatmul.f32.gmra.mxu0 %v273
      %v601 = vpop.f32.mrf.mxu0
      %v602 = vadd.f32 0.0, %v601
      %603 = vmatmul.f32.gmra.mxu0 %v275
      %v604 = vpop.f32.mrf.mxu0
      %v605 = vadd.f32 0.0, %v604
      %606 = vdwg.mxu0
      %607 = vmatpush.msra.mxu0 0.0
      %608 = vmatpush.msra.mxu0 0.0
      %609 = vmatpush.msra.mxu0 0.0
      %610 = vmatpush.msra.mxu0 0.0
      %611 = vmatpush.msra.mxu0 0.0
      %612 = vmatpush.msra.mxu0 0.0
      %613 = vmatpush.msra.mxu0 0.0
      %614 = vmatpush.msra.mxu0 %v326
      %615 = vmatpush.msra.mxu0 %v324
      %616 = vmatpush.msra.mxu0 %v322
      %617 = vmatpush.msra.mxu0 %v320
      %618 = vmatpush.msra.mxu0 %v318
      %619 = vmatpush.msra.mxu0 %v316
      %620 = vmatpush.msra.mxu0 %v314
      %621 = vmatpush.msra.mxu0 %v312
      %622 = vmatpush.msra.mxu0 %v310
      %623 = vmatmul.f32.gmra.mxu0 %v329
      %v624 = vpop.f32.mrf.mxu0
      %v625 = vadd.f32 %v551, %v624
      %626 = vmatmul.f32.gmra.mxu0 %v332
      %v627 = vpop.f32.mrf.mxu0
      %v628 = vadd.f32 %v554, %v627
      %629 = vmatmul.f32.gmra.mxu0 %v335
      %v630 = vpop.f32.mrf.mxu0
      %v631 = vadd.f32 %v557, %v630
      %632 = vmatmul.f32.gmra.mxu0 %v338
      %v633 = vpop.f32.mrf.mxu0
      %v634 = vadd.f32 %v560, %v633
      %635 = vmatmul.f32.gmra.mxu0 %v341
      %v636 = vpop.f32.mrf.mxu0
      %v637 = vadd.f32 %v563, %v636
      %638 = vmatmul.f32.gmra.mxu0 %v344
      %v639 = vpop.f32.mrf.mxu0
      %v640 = vadd.f32 %v566, %v639
      %641 = vmatmul.f32.gmra.mxu0 %v347
      %v642 = vpop.f32.mrf.mxu0
      %v643 = vadd.f32 %v569, %v642
      %644 = vmatmul.f32.gmra.mxu0 %v350
      %v645 = vpop.f32.mrf.mxu0
      %v646 = vadd.f32 %v572, %v645
      %647 = vmatmul.f32.gmra.mxu0 %v353
      %v648 = vpop.f32.mrf.mxu0
      %v649 = vadd.f32 %v575, %v648
      %650 = vmatmul.f32.gmra.mxu0 %v356
      %v651 = vpop.f32.mrf.mxu0
      %v652 = vadd.f32 %v578, %v651
      %653 = vmatmul.f32.gmra.mxu0 %v359
      %v654 = vpop.f32.mrf.mxu0
      %v655 = vadd.f32 %v581, %v654
      %656 = vmatmul.f32.gmra.mxu0 %v362
      %v657 = vpop.f32.mrf.mxu0
      %v658 = vadd.f32 %v584, %v657
      %659 = vmatmul.f32.gmra.mxu0 %v365
      %v660 = vpop.f32.mrf.mxu0
      %v661 = vadd.f32 %v587, %v660
      %662 = vmatmul.f32.gmra.mxu0 %v368
      %v663 = vpop.f32.mrf.mxu0
      %v664 = vadd.f32 %v590, %v663
      %665 = vmatmul.f32.gmra.mxu0 %v371
      %v666 = vpop.f32.mrf.mxu0
      %v667 = vadd.f32 %v593, %v666
      %668 = vmatmul.f32.gmra.mxu0 %v374
      %v669 = vpop.f32.mrf.mxu0
      %v670 = vadd.f32 %v596, %v669
      %671 = vmatmul.f32.gmra.mxu0 %v377
      %v672 = vpop.f32.mrf.mxu0
      %v673 = vadd.f32 %v599, %v672
      %674 = vmatmul.f32.gmra.mxu0 %v380
      %v675 = vpop.f32.mrf.mxu0
      %v676 = vadd.f32 %v602, %v675
      %677 = vmatmul.f32.gmra.mxu0 %v383
      %v678 = vpop.f32.mrf.mxu0
      %v679 = vadd.f32 %v605, %v678
      %680 = vdwg.mxu0
      %681 = vst [vmem:[%s236] sm:$0xff] %v477
      %682 = vst [vmem:[%s236 + $0x8] sm:$0xff] %v625
      %683 = vst [vmem:[%s236 + $0x10] sm:$0xff] %v480
      %684 = vst [vmem:[%s236 + $0x18] sm:$0xff] %v628
      %685 = vst [vmem:[%s236 + $0x20] sm:$0xff] %v483
      %686 = vst [vmem:[%s236 + $0x28] sm:$0xff] %v631
      %687 = vst [vmem:[%s236 + $0x30] sm:$0xff] %v486
      %688 = vst [vmem:[%s236 + $0x38] sm:$0xff] %v634
      %689 = vst [vmem:[%s236 + $0x40] sm:$0xff] %v489
      %690 = vst [vmem:[%s236 + $0x48] sm:$0xff] %v637
      %691 = vst [vmem:[%s236 + $0x50] sm:$0xff] %v492
      %692 = vst [vmem:[%s236 + $0x58] sm:$0xff] %v640
      %693 = vst [vmem:[%s236 + $0x60] sm:$0xff] %v495
      %694 = vst [vmem:[%s236 + $0x68] sm:$0xff] %v643
      %695 = vst [vmem:[%s236 + $0x70] sm:$0xff] %v498
      %696 = vst [vmem:[%s236 + $0x78] sm:$0xff] %v646
      %697 = vst [vmem:[%s236 + $0x80] sm:$0xff] %v501
      %698 = vst [vmem:[%s236 + $0x88] sm:$0xff] %v649
      %699 = vst [vmem:[%s236 + $0x90] sm:$0xff] %v504
      %700 = vst [vmem:[%s236 + $0x98] sm:$0xff] %v652
      %701 = vst [vmem:[%s236 + $0xa0] sm:$0xff] %v507
      %702 = vst [vmem:[%s236 + $0xa8] sm:$0xff] %v655
      %703 = vst [vmem:[%s236 + $0xb0] sm:$0xff] %v510
      %704 = vst [vmem:[%s236 + $0xb8] sm:$0xff] %v658
      %705 = vst [vmem:[%s236 + $0xc0] sm:$0xff] %v513
      %706 = vst [vmem:[%s236 + $0xc8] sm:$0xff] %v661
      %707 = vst [vmem:[%s236 + $0xd0] sm:$0xff] %v516
      %708 = vst [vmem:[%s236 + $0xd8] sm:$0xff] %v664
      %709 = vst [vmem:[%s236 + $0xe0] sm:$0xff] %v519
      %710 = vst [vmem:[%s236 + $0xe8] sm:$0xff] %v667
      %711 = vst [vmem:[%s236 + $0xf0] sm:$0xff] %v522
      %712 = vst [vmem:[%s236 + $0xf8] sm:$0xff] %v670
      %713 = vst [vmem:[%s236 + $0x100] sm:$0xff] %v525
      %714 = vst [vmem:[%s236 + $0x108] sm:$0xff] %v673
      %715 = vst [vmem:[%s236 + $0x110] sm:$0xff] %v528
      %716 = vst [vmem:[%s236 + $0x118] sm:$0xff] %v676
      %717 = vst [vmem:[%s236 + $0x120] sm:$0xff] %v531
      %718 = vst [vmem:[%s236 + $0x128] sm:$0xff] %v679
      %s719 = smul.u32 19, %s18
      %s720 = smul.u32 2, %s19
      %p721 = scmp.lt.s32.totalorder %s719, 37
      %s722 = scalar_select %p721, %s719, 37
      %p723 = scmp.lt.s32.totalorder %s720, 1
      %s724 = scalar_select %p723, %s720, 1
      %s725 = smul.addr %s722, 2
      %s726 = sadd.s32 %s724, %s725
      %s727 = smul.addr %s726, 8
      %s728 = scalar_lea.vmem %s2, %s727
      // Predicated region
      $region29: #{tpu_custom_call.1} parent=27 // pred_check
        %p729 = pneg %p108
      $region30: #{tpu_custom_call.1} parent=27 // pred_check_branch
        %731 = sbr.rel (%p729) target = $region32
      $region31: #{tpu_custom_call.1} parent=27 // pred_region
        %s732 = smul.u32 19, %s18
        %s733 = smul.u32 2, %s19
      $region32: #{tpu_custom_call.1} parent=27 // pred_fallthru
        _
    $region28: #{tpu_custom_call.1} parent=5 // pred_fallthru
      _
    %p734 = scmp.le.s32.totalorder 2, %s8
    // Predicated region
    $region33: #{tpu_custom_call.1} parent=5 // pred_check
      %p735 = pneg %p734
    $region34: #{tpu_custom_call.1} parent=5 // pred_check_branch
      %737 = sbr.rel (%p735) target = $region36
    $region35: #{tpu_custom_call.1} parent=5 // pred_region
      %s738 = ssub.s32 %s8, 2
      // Predicated region
      $region37: #{tpu_custom_call.1} parent=35 // pred_check
        %p739 = pneg %p114
      $region38: #{tpu_custom_call.1} parent=35 // pred_check_branch
        %741 = sbr.rel (%p739) target = $region40
      $region39: #{tpu_custom_call.1} parent=35 // pred_region
        %s742 = smul.u32 19, %s21
        %s743 = smul.u32 2, %s22
        %p744 = scmp.lt.s32.totalorder %s742, 37
        %s745 = scalar_select %p744, %s742, 37
        %p746 = scmp.lt.s32.totalorder %s743, 1
        %s747 = scalar_select %p746, %s743, 1
        %s748 = smul.addr %s745, 2
        %s749 = sadd.s32 %s747, %s748
        %s750 = smul.addr %s749, 8
        %s751 = scalar_lea.vmem %s2, %s750
      $region40: #{tpu_custom_call.1} parent=35 // pred_fallthru
        _
    $region36: #{tpu_custom_call.1} parent=5 // pred_fallthru
      _
  $region6: #{tpu_custom_call.1} parent=0 // loop_footer
    %s12 = sadd.s32 1, %s8
  $region7: #{tpu_custom_call.1} parent=0 // loop_footer_branch
    %7 = sbr.rel target = $region3
  $region8: #{tpu_custom_call.1} parent=0 // loop_exit
    _

</llo_original>
